<compile_context>
chip_gen: v7x
topology: tpu7x:2x2x1
jax: 0.10.0
libtpu: 0.0.40
codegen_flags: <defaults>
</compile_context>

<pallas_src>
import functools

import jax
import jax.numpy as jnp
from jax.experimental import pallas as pl
from jax.experimental.pallas import tpu as pltpu


# ---------------------------------------------------------------------------
# Helpers
# ---------------------------------------------------------------------------
def _round_up(n, m):
    return ((n + m - 1) // m) * m


def _sigmoid(x):
    # logistic = 1 / (1 + exp(-x)); exp + approximate reciprocal both land on
    # the EUP slot, keeping the big decoder sigmoid off the VALU divide path.
    return pl.reciprocal(1.0 + jnp.exp(-x), approx=True)


# ---------------------------------------------------------------------------
# Pallas kernels
# ---------------------------------------------------------------------------
def encoder_kernel(x_ref, eps_ref, w1_ref, b1_ref, w2_ref, b2_ref,
                   wmv_ref, bmv_ref, pk_ref, z_ref):
    # Hidden layers: bf16 MXU operands, f32 accumulate, f32 elementwise.
    h = jnp.dot(x_ref[...].astype(jnp.bfloat16), w1_ref[...],
                preferred_element_type=jnp.float32) + b1_ref[...]
    h = jnp.maximum(h, 0.0)
    h = jnp.dot(h.astype(jnp.bfloat16), w2_ref[...],
                preferred_element_type=jnp.float32) + b2_ref[...]
    h = jnp.maximum(h, 0.0)

    # Fused fc_mean | fc_logvar head, each padded to LAT_PAD (=128) lanes.
    head = jnp.dot(h.astype(jnp.bfloat16), wmv_ref[...],
                   preferred_element_type=jnp.float32) + bmv_ref[...]
    lat_pad = head.shape[1] // 2
    mean = head[:, :lat_pad]
    logvar = head[:, lat_pad:]

    # get_params_forward, computed lane-wise over the padded 128 lanes.
    sd = jnp.exp(0.5 * logvar)            # lanes [0:latent-1] = reparam scale
    sig_mean = _sigmoid(mean)
    exp_lv = jnp.exp(logvar)
    alpha_full = sig_mean * exp_lv        # lane latent-1 = alpha
    beta_full = exp_lv - alpha_full       # lane latent-1 = beta
    # Normal reparameterization; eps is zero-padded beyond latent-1, and the
    # decoder's first weight rows >= latent-1 are zero, so padded lanes of z
    # are inert.
    z = mean + sd * eps_ref[...]

    # Lane-dense packed output: [mean | sd | alpha | beta], each lat_pad wide.
    pk_ref[:, 0 * lat_pad:1 * lat_pad] = mean
    pk_ref[:, 1 * lat_pad:2 * lat_pad] = sd
    pk_ref[:, 2 * lat_pad:3 * lat_pad] = alpha_full
    pk_ref[:, 3 * lat_pad:4 * lat_pad] = beta_full
    z_ref[...] = z


def decoder_kernel(z_ref, c_ref, w1_ref, b1_ref, w2_ref, b2_ref,
                   wo_ref, bo_ref, out_ref):
    h = jnp.dot(z_ref[...].astype(jnp.bfloat16), w1_ref[...],
                preferred_element_type=jnp.float32) + b1_ref[...]
    h = jnp.maximum(h, 0.0)
    h = jnp.dot(h.astype(jnp.bfloat16), w2_ref[...],
                preferred_element_type=jnp.float32) + b2_ref[...]
    h = jnp.maximum(h, 0.0)
    logits = jnp.dot(h.astype(jnp.bfloat16), wo_ref[...],
                     preferred_element_type=jnp.float32) + bo_ref[...]
    c = c_ref[:, 0:1]                      # per-row Beta sample (lane 0)
    out_ref[...] = _sigmoid(logits) * c    # sigmoid(decoder(z)) * c


# ---------------------------------------------------------------------------
# Parameter init (deterministic, mimics nn.Linear uniform init) + packing
# ---------------------------------------------------------------------------
def _linear_params(key, fan_in, fan_out):
    kw, kb = jax.random.split(key)
    bound = 1.0 / jnp.sqrt(float(fan_in))
    w = jax.random.uniform(kw, (fan_in, fan_out), jnp.float32, -bound, bound)
    b = jax.random.uniform(kb, (1, fan_out), jnp.float32, -bound, bound)
    return w, b


def init_smvae_beta_params(key, input_size, enc_hidden, dec_hidden, latent_size):
    keys = jax.random.split(key, 7)
    dec_latent = latent_size - 1  # dimension_decrease = 1
    p = {}
    # Encoder
    p["e_w1"], p["e_b1"] = _linear_params(keys[0], input_size, enc_hidden[0])
    p["e_w2"], p["e_b2"] = _linear_params(keys[1], enc_hidden[0], enc_hidden[1])
    p["e_wm"], p["e_bm"] = _linear_params(keys[2], enc_hidden[1], latent_size)
    p["e_wv"], p["e_bv"] = _linear_params(keys[3], enc_hidden[1], latent_size)
    # Decoder
    p["d_w1"], p["d_b1"] = _linear_params(keys[4], dec_latent, dec_hidden[0])
    p["d_w2"], p["d_b2"] = _linear_params(keys[5], dec_hidden[0], dec_hidden[1])
    p["d_wo"], p["d_bo"] = _linear_params(keys[6], dec_hidden[1], input_size)
    return p


def prepare_params(p, latent_size):
    """Pack weights for the kernels: bf16 MXU weights, fused + lane-padded head."""
    lat_pad = _round_up(latent_size, 128)
    H2 = p["e_wm"].shape[0]

    wm_pad = jnp.zeros((H2, lat_pad), jnp.float32).at[:, :latent_size].set(p["e_wm"])
    wv_pad = jnp.zeros((H2, lat_pad), jnp.float32).at[:, :latent_size].set(p["e_wv"])
    bm_pad = jnp.zeros((1, lat_pad), jnp.float32).at[:, :latent_size].set(p["e_bm"])
    bv_pad = jnp.zeros((1, lat_pad), jnp.float32).at[:, :latent_size].set(p["e_bv"])

    d_w1 = p["d_w1"]  # (latent_size - 1, H1d)
    d_w1_pad = jnp.zeros((lat_pad, d_w1.shape[1]), jnp.float32)
    d_w1_pad = d_w1_pad.at[:latent_size - 1, :].set(d_w1)

    return {
        "e_w1": p["e_w1"].astype(jnp.bfloat16), "e_b1": p["e_b1"],
        "e_w2": p["e_w2"].astype(jnp.bfloat16), "e_b2": p["e_b2"],
        "e_wmv": jnp.concatenate([wm_pad, wv_pad], axis=1).astype(jnp.bfloat16),
        "e_bmv": jnp.concatenate([bm_pad, bv_pad], axis=1),
        "d_w1": d_w1_pad.astype(jnp.bfloat16), "d_b1": p["d_b1"],
        "d_w2": p["d_w2"].astype(jnp.bfloat16), "d_b2": p["d_b2"],
        "d_wo": p["d_wo"].astype(jnp.bfloat16), "d_bo": p["d_bo"],
    }


# ---------------------------------------------------------------------------
# Forward pass (SMVAE_BETA.forward)
# ---------------------------------------------------------------------------
_VMEM_LIMIT = 32 * 1024 * 1024  # safe under v7x's 64 MiB physical VMEM


@functools.partial(jax.jit, static_argnames=("latent_size",))
def smvae_beta_forward(prep, x, key, *, latent_size):
    B = x.shape[0]
    input_size = prep["d_wo"].shape[1]
    lat_pad = prep["e_wmv"].shape[1] // 2
    H1e, H2e = prep["e_w1"].shape[1], prep["e_w2"].shape[1]
    H1d, H2d = prep["d_w1"].shape[1], prep["d_w2"].shape[1]
    Lm1 = latent_size - 1

    # Batch tiling: TM rows per grid step, weights resident across steps.
    TM = min(256, _round_up(B, 8))
    B_pad = _round_up(B, TM)
    grid = (B_pad // TM,)

    xf = x.reshape(B, -1).astype(jnp.float32)          # x.view(-1, input_size)
    xf = jnp.pad(xf, ((0, B_pad - B), (0, 0)))

    eps_key, beta_key = jax.random.split(key)
    eps = jax.random.normal(eps_key, (B, Lm1), jnp.float32)
    eps = jnp.pad(eps, ((0, B_pad - B), (0, lat_pad - Lm1)))

    row = lambda i: (i, 0)       # batch-tiled arrays
    const = lambda i: (0, 0)     # resident weights / biases

    cparams = pltpu.CompilerParams(dimension_semantics=("parallel",),
                                   vmem_limit_bytes=_VMEM_LIMIT)

    enc_cost = pl.CostEstimate(
        flops=2 * B_pad * (input_size * H1e + H1e * H2e + H2e * 2 * lat_pad),
        transcendentals=4 * B_pad * lat_pad,
        bytes_accessed=(4 * B_pad * (input_size + lat_pad)
                        + 2 * (input_size * H1e + H1e * H2e + H2e * 2 * lat_pad)
                        + 4 * B_pad * 5 * lat_pad),
    )

    pk, z_pad = pl.pallas_call(
        encoder_kernel,
        grid=grid,
        out_shape=(jax.ShapeDtypeStruct((B_pad, 4 * lat_pad), jnp.float32),
                   jax.ShapeDtypeStruct((B_pad, lat_pad), jnp.float32)),
        in_specs=[
            pl.BlockSpec((TM, input_size), row),
            pl.BlockSpec((TM, lat_pad), row),
            pl.BlockSpec(prep["e_w1"].shape, const),
            pl.BlockSpec(prep["e_b1"].shape, const),
            pl.BlockSpec(prep["e_w2"].shape, const),
            pl.BlockSpec(prep["e_b2"].shape, const),
            pl.BlockSpec(prep["e_wmv"].shape, const),
            pl.BlockSpec(prep["e_bmv"].shape, const),
        ],
        out_specs=(pl.BlockSpec((TM, 4 * lat_pad), row),
                   pl.BlockSpec((TM, lat_pad), row)),
        compiler_params=cparams,
        cost_estimate=enc_cost,
    )(xf, eps, prep["e_w1"], prep["e_b1"], prep["e_w2"], prep["e_b2"],
      prep["e_wmv"], prep["e_bmv"])

    # Unpack the lane-dense slab (free layout plumbing in the wrapper).
    mu = pk[:B, 0:Lm1]                                   # mean[:, :-1]
    var = pk[:B, lat_pad:lat_pad + Lm1]                  # exp(0.5*logvar[:, :-1])
    alpha = pk[:B, 2 * lat_pad + Lm1]                    # sigmoid(mean[:,-1])*exp(logvar[:,-1])
    beta = pk[:B, 3 * lat_pad + Lm1]                     # exp(logvar[:,-1]) - alpha

    # TODO(synk): Beta(alpha, beta).rsample() uses rejection-sampled gammas;
    # no clean Pallas equivalent, sampled in plain JAX here.
    c = jax.random.beta(beta_key, alpha, beta)           # (B,)
    c_pad = jnp.zeros((B_pad, 128), jnp.float32).at[:B, 0].set(c)

    dec_cost = pl.CostEstimate(
        flops=2 * B_pad * (lat_pad * H1d + H1d * H2d + H2d * input_size),
        transcendentals=B_pad * input_size,
        bytes_accessed=(4 * B_pad * (lat_pad + 128)
                        + 2 * (lat_pad * H1d + H1d * H2d + H2d * input_size)
                        + 4 * B_pad * input_size),
    )

    out = pl.pallas_call(
        decoder_kernel,
        grid=grid,
        out_shape=jax.ShapeDtypeStruct((B_pad, input_size), jnp.float32),
        in_specs=[
            pl.BlockSpec((TM, lat_pad), row),
            pl.BlockSpec((TM, 128), row),
            pl.BlockSpec(prep["d_w1"].shape, const),
            pl.BlockSpec(prep["d_b1"].shape, const),
            pl.BlockSpec(prep["d_w2"].shape, const),
            pl.BlockSpec(prep["d_b2"].shape, const),
            pl.BlockSpec(prep["d_wo"].shape, const),
            pl.BlockSpec(prep["d_bo"].shape, const),
        ],
        out_specs=pl.BlockSpec((TM, input_size), row),
        compiler_params=cparams,
        cost_estimate=dec_cost,
    )(z_pad, c_pad, prep["d_w1"], prep["d_b1"], prep["d_w2"], prep["d_b2"],
      prep["d_wo"], prep["d_bo"])

    x_recon = out[:B]
    return x_recon, (mu, alpha), (var, beta)


# ---------------------------------------------------------------------------
if __name__ == "__main__":
    # Small, forward-consistent shapes:
    #   x: (B=2, C=1, H=16, W=16) -> input_size = 256
    #   enc_hidden = [256, 32], dec_hidden = [32, 256], latent = 10 (torch defaults)
    B, C, H, W = 2, 1, 16, 16
    input_size = C * H * W
    enc_hidden = [256, 32]
    dec_hidden = [32, 256]
    latent_size = 10

    root = jax.random.PRNGKey(0)
    k_params, k_x, k_noise = jax.random.split(root, 3)

    raw_params = init_smvae_beta_params(k_params, input_size, enc_hidden,
                                        dec_hidden, latent_size)
    prep = prepare_params(raw_params, latent_size)
    x = jax.random.uniform(k_x, (B, C, H, W), jnp.float32)  # image-like input

    x_recon, (mu, alpha), (var, beta) = smvae_beta_forward(
        prep, x, k_noise, latent_size=latent_size)
    jax.block_until_ready((x_recon, mu, alpha, var, beta))

    assert x_recon.shape == (B, input_size)
    assert mu.shape == (B, latent_size - 1) and var.shape == (B, latent_size - 1)
    assert alpha.shape == (B,) and beta.shape == (B,)
    assert bool(jnp.all(jnp.isfinite(x_recon)))
    print("KERNEL_OK")
</pallas_src>

<mosaic_0001>
module attributes {stable_mosaic.version = 11 : i64} {
  func.func @encoder_kernel(%arg0: i32, %arg1: memref<8x256xf32, #tpu.memory_space<vmem>>, %arg2: memref<8x128xf32, #tpu.memory_space<vmem>>, %arg3: memref<256x256xbf16, #tpu.memory_space<vmem>>, %arg4: memref<1x256xf32, #tpu.memory_space<vmem>>, %arg5: memref<256x32xbf16, #tpu.memory_space<vmem>>, %arg6: memref<1x32xf32, #tpu.memory_space<vmem>>, %arg7: memref<32x256xbf16, #tpu.memory_space<vmem>>, %arg8: memref<1x256xf32, #tpu.memory_space<vmem>>, %arg9: memref<8x512xf32, #tpu.memory_space<vmem>>, %arg10: memref<8x128xf32, #tpu.memory_space<vmem>>) attributes {dimension_semantics = [#tpu.dimension_semantics<parallel>], iteration_bounds = array<i64: 1>, scalar_prefetch = 0 : i64, scratch_operands = 0 : i64, tpu.core_type = #tpu.core_type<tc>, window_params = [{transform_indices = @transform_0, window_bounds = array<i64: 8, 256>}, {transform_indices = @transform_1, window_bounds = array<i64: 8, 128>}, {pipeline_mode = #tpu.pipeline_mode<synchronous>, transform_indices = @transform_2, window_bounds = array<i64: 256, 256>}, {pipeline_mode = #tpu.pipeline_mode<synchronous>, transform_indices = @transform_3, window_bounds = array<i64: 1, 256>}, {pipeline_mode = #tpu.pipeline_mode<synchronous>, transform_indices = @transform_4, window_bounds = array<i64: 256, 32>}, {pipeline_mode = #tpu.pipeline_mode<synchronous>, transform_indices = @transform_5, window_bounds = array<i64: 1, 32>}, {pipeline_mode = #tpu.pipeline_mode<synchronous>, transform_indices = @transform_6, window_bounds = array<i64: 32, 256>}, {pipeline_mode = #tpu.pipeline_mode<synchronous>, transform_indices = @transform_7, window_bounds = array<i64: 1, 256>}, {transform_indices = @transform_8, window_bounds = array<i64: 8, 512>}, {transform_indices = @transform_9, window_bounds = array<i64: 8, 128>}]} {
    %c0 = arith.constant 0 : index
    %c0_0 = arith.constant 0 : index
    %0 = vector.load %arg1[%c0, %c0_0] : memref<8x256xf32, #tpu.memory_space<vmem>>, vector<8x256xf32>
    %1 = arith.truncf %0 : vector<8x256xf32> to vector<8x256xbf16>
    %c0_1 = arith.constant 0 : index
    %c0_2 = arith.constant 0 : index
    %2 = vector.load %arg3[%c0_1, %c0_2] : memref<256x256xbf16, #tpu.memory_space<vmem>>, vector<256x256xbf16>
    %cst = arith.constant dense<0.000000e+00> : vector<8x256xf32>
    %3 = tpu.matmul %1, %2, %cst {dimension_numbers = #tpu.dot_dimension_numbers<[1], [0], [0], [1], [0, 0, 1, 1], [], []>} : vector<8x256xbf16>, vector<256x256xbf16>, vector<8x256xf32> -> vector<8x256xf32>
    %c0_3 = arith.constant 0 : index
    %c0_4 = arith.constant 0 : index
    %4 = vector.load %arg4[%c0_3, %c0_4] : memref<1x256xf32, #tpu.memory_space<vmem>>, vector<1x256xf32>
    %5 = vector.broadcast %4 : vector<1x256xf32> to vector<8x256xf32>
    %6 = arith.addf %3, %5 : vector<8x256xf32>
    %cst_5 = arith.constant 0.000000e+00 : f32
    %7 = vector.broadcast %cst_5 : f32 to vector<8x256xf32>
    %8 = arith.maximumf %6, %7 : vector<8x256xf32>
    %9 = arith.truncf %8 : vector<8x256xf32> to vector<8x256xbf16>
    %c0_6 = arith.constant 0 : index
    %c0_7 = arith.constant 0 : index
    %10 = vector.load %arg5[%c0_6, %c0_7] : memref<256x32xbf16, #tpu.memory_space<vmem>>, vector<256x32xbf16>
    %cst_8 = arith.constant dense<0.000000e+00> : vector<8x32xf32>
    %11 = tpu.matmul %9, %10, %cst_8 {dimension_numbers = #tpu.dot_dimension_numbers<[1], [0], [0], [1], [0, 0, 1, 1], [], []>} : vector<8x256xbf16>, vector<256x32xbf16>, vector<8x32xf32> -> vector<8x32xf32>
    %c0_9 = arith.constant 0 : index
    %c0_10 = arith.constant 0 : index
    %12 = vector.load %arg6[%c0_9, %c0_10] : memref<1x32xf32, #tpu.memory_space<vmem>>, vector<1x32xf32>
    %13 = vector.broadcast %12 : vector<1x32xf32> to vector<8x32xf32>
    %14 = arith.addf %11, %13 : vector<8x32xf32>
    %cst_11 = arith.constant 0.000000e+00 : f32
    %15 = vector.broadcast %cst_11 : f32 to vector<8x32xf32>
    %16 = arith.maximumf %14, %15 : vector<8x32xf32>
    %17 = arith.truncf %16 : vector<8x32xf32> to vector<8x32xbf16>
    %c0_12 = arith.constant 0 : index
    %c0_13 = arith.constant 0 : index
    %18 = vector.load %arg7[%c0_12, %c0_13] : memref<32x256xbf16, #tpu.memory_space<vmem>>, vector<32x256xbf16>
    %cst_14 = arith.constant dense<0.000000e+00> : vector<8x256xf32>
    %19 = tpu.matmul %17, %18, %cst_14 {dimension_numbers = #tpu.dot_dimension_numbers<[1], [0], [0], [1], [0, 0, 1, 1], [], []>} : vector<8x32xbf16>, vector<32x256xbf16>, vector<8x256xf32> -> vector<8x256xf32>
    %c0_15 = arith.constant 0 : index
    %c0_16 = arith.constant 0 : index
    %20 = vector.load %arg8[%c0_15, %c0_16] : memref<1x256xf32, #tpu.memory_space<vmem>>, vector<1x256xf32>
    %21 = vector.broadcast %20 : vector<1x256xf32> to vector<8x256xf32>
    %22 = arith.addf %19, %21 : vector<8x256xf32>
    %23 = vector.extract_strided_slice %22 {offsets = [0, 0], sizes = [8, 128], strides = [1, 1]} : vector<8x256xf32> to vector<8x128xf32>
    %24 = vector.extract_strided_slice %22 {offsets = [0, 128], sizes = [8, 128], strides = [1, 1]} : vector<8x256xf32> to vector<8x128xf32>
    %cst_17 = arith.constant 5.000000e-01 : f32
    %25 = vector.broadcast %cst_17 : f32 to vector<8x128xf32>
    %26 = arith.mulf %25, %24 : vector<8x128xf32>
    %27 = math.exp %26 : vector<8x128xf32>
    %cst_18 = arith.constant 0.000000e+00 : f32
    %28 = vector.broadcast %cst_18 : f32 to vector<8x128xf32>
    %29 = arith.subf %28, %23 : vector<8x128xf32>
    %30 = math.exp %29 : vector<8x128xf32>
    %cst_19 = arith.constant 1.000000e+00 : f32
    %31 = vector.broadcast %cst_19 : f32 to vector<8x128xf32>
    %32 = arith.addf %31, %30 : vector<8x128xf32>
    %33 = tpu.reciprocal %32 {approx = true} : vector<8x128xf32> -> vector<8x128xf32>
    %34 = math.exp %24 : vector<8x128xf32>
    %35 = arith.mulf %33, %34 : vector<8x128xf32>
    %36 = arith.subf %34, %35 : vector<8x128xf32>
    %c0_20 = arith.constant 0 : index
    %c0_21 = arith.constant 0 : index
    %37 = vector.load %arg2[%c0_20, %c0_21] : memref<8x128xf32, #tpu.memory_space<vmem>>, vector<8x128xf32>
    %38 = arith.mulf %27, %37 : vector<8x128xf32>
    %39 = arith.addf %23, %38 : vector<8x128xf32>
    %c0_22 = arith.constant 0 : index
    %c0_23 = arith.constant 0 : index
    %40 = vector.load %arg9[%c0_22, %c0_23] : memref<8x512xf32, #tpu.memory_space<vmem>>, vector<8x128xf32>
    tpu.vector_store %arg9[%c0_22, %c0_23], %23 {strides = array<i32>} : memref<8x512xf32, #tpu.memory_space<vmem>>, vector<8x128xf32>,
    %c0_24 = arith.constant 0 : index
    %c128 = arith.constant 128 : index
    %41 = vector.load %arg9[%c0_24, %c128] : memref<8x512xf32, #tpu.memory_space<vmem>>, vector<8x128xf32>
    tpu.vector_store %arg9[%c0_24, %c128], %27 {strides = array<i32>} : memref<8x512xf32, #tpu.memory_space<vmem>>, vector<8x128xf32>,
    %c0_25 = arith.constant 0 : index
    %c256 = arith.constant 256 : index
    %42 = vector.load %arg9[%c0_25, %c256] : memref<8x512xf32, #tpu.memory_space<vmem>>, vector<8x128xf32>
    tpu.vector_store %arg9[%c0_25, %c256], %35 {strides = array<i32>} : memref<8x512xf32, #tpu.memory_space<vmem>>, vector<8x128xf32>,
    %c0_26 = arith.constant 0 : index
    %c384 = arith.constant 384 : index
    %43 = vector.load %arg9[%c0_26, %c384] : memref<8x512xf32, #tpu.memory_space<vmem>>, vector<8x128xf32>
    tpu.vector_store %arg9[%c0_26, %c384], %36 {strides = array<i32>} : memref<8x512xf32, #tpu.memory_space<vmem>>, vector<8x128xf32>,
    %c0_27 = arith.constant 0 : index
    %c0_28 = arith.constant 0 : index
    %44 = vector.load %arg10[%c0_27, %c0_28] : memref<8x128xf32, #tpu.memory_space<vmem>>, vector<8x128xf32>
    tpu.vector_store %arg10[%c0_27, %c0_28], %39 {strides = array<i32>} : memref<8x128xf32, #tpu.memory_space<vmem>>, vector<8x128xf32>,
    return
  }
  func.func @transform_0(%arg0: i32) -> (i32, i32) {
    %c0_i32 = arith.constant 0 : i32
    %c0_i32_0 = arith.constant 0 : i32
    return %arg0, %c0_i32 : i32, i32
  }
  func.func @transform_1(%arg0: i32) -> (i32, i32) {
    %c0_i32 = arith.constant 0 : i32
    %c0_i32_0 = arith.constant 0 : i32
    return %arg0, %c0_i32 : i32, i32
  }
  func.func @transform_2(%arg0: i32) -> (i32, i32) {
    %c0_i32 = arith.constant 0 : i32
    %c0_i32_0 = arith.constant 0 : i32
    %c0_i32_1 = arith.constant 0 : i32
    return %c0_i32, %c0_i32_0 : i32, i32
  }
  func.func @transform_3(%arg0: i32) -> (i32, i32) {
    %c0_i32 = arith.constant 0 : i32
    %c0_i32_0 = arith.constant 0 : i32
    %c0_i32_1 = arith.constant 0 : i32
    return %c0_i32, %c0_i32_0 : i32, i32
  }
  func.func @transform_4(%arg0: i32) -> (i32, i32) {
    %c0_i32 = arith.constant 0 : i32
    %c0_i32_0 = arith.constant 0 : i32
    %c0_i32_1 = arith.constant 0 : i32
    return %c0_i32, %c0_i32_0 : i32, i32
  }
  func.func @transform_5(%arg0: i32) -> (i32, i32) {
    %c0_i32 = arith.constant 0 : i32
    %c0_i32_0 = arith.constant 0 : i32
    %c0_i32_1 = arith.constant 0 : i32
    return %c0_i32, %c0_i32_0 : i32, i32
  }
  func.func @transform_6(%arg0: i32) -> (i32, i32) {
    %c0_i32 = arith.constant 0 : i32
    %c0_i32_0 = arith.constant 0 : i32
    %c0_i32_1 = arith.constant 0 : i32
    return %c0_i32, %c0_i32_0 : i32, i32
  }
  func.func @transform_7(%arg0: i32) -> (i32, i32) {
    %c0_i32 = arith.constant 0 : i32
    %c0_i32_0 = arith.constant 0 : i32
    %c0_i32_1 = arith.constant 0 : i32
    return %c0_i32, %c0_i32_0 : i32, i32
  }
  func.func @transform_8(%arg0: i32) -> (i32, i32) {
    %c0_i32 = arith.constant 0 : i32
    %c0_i32_0 = arith.constant 0 : i32
    return %arg0, %c0_i32 : i32, i32
  }
  func.func @transform_9(%arg0: i32) -> (i32, i32) {
    %c0_i32 = arith.constant 0 : i32
    %c0_i32_0 = arith.constant 0 : i32
    return %arg0, %c0_i32 : i32, i32
  }
}

module attributes {stable_mosaic.version = 11 : i64} {
  func.func @decoder_kernel(%arg0: i32, %arg1: memref<8x128xf32, #tpu.memory_space<vmem>>, %arg2: memref<8x128xf32, #tpu.memory_space<vmem>>, %arg3: memref<128x32xbf16, #tpu.memory_space<vmem>>, %arg4: memref<1x32xf32, #tpu.memory_space<vmem>>, %arg5: memref<32x256xbf16, #tpu.memory_space<vmem>>, %arg6: memref<1x256xf32, #tpu.memory_space<vmem>>, %arg7: memref<256x256xbf16, #tpu.memory_space<vmem>>, %arg8: memref<1x256xf32, #tpu.memory_space<vmem>>, %arg9: memref<8x256xf32, #tpu.memory_space<vmem>>) attributes {dimension_semantics = [#tpu.dimension_semantics<parallel>], iteration_bounds = array<i64: 1>, scalar_prefetch = 0 : i64, scratch_operands = 0 : i64, tpu.core_type = #tpu.core_type<tc>, window_params = [{transform_indices = @transform_0, window_bounds = array<i64: 8, 128>}, {transform_indices = @transform_1, window_bounds = array<i64: 8, 128>}, {pipeline_mode = #tpu.pipeline_mode<synchronous>, transform_indices = @transform_2, window_bounds = array<i64: 128, 32>}, {pipeline_mode = #tpu.pipeline_mode<synchronous>, transform_indices = @transform_3, window_bounds = array<i64: 1, 32>}, {pipeline_mode = #tpu.pipeline_mode<synchronous>, transform_indices = @transform_4, window_bounds = array<i64: 32, 256>}, {pipeline_mode = #tpu.pipeline_mode<synchronous>, transform_indices = @transform_5, window_bounds = array<i64: 1, 256>}, {pipeline_mode = #tpu.pipeline_mode<synchronous>, transform_indices = @transform_6, window_bounds = array<i64: 256, 256>}, {pipeline_mode = #tpu.pipeline_mode<synchronous>, transform_indices = @transform_7, window_bounds = array<i64: 1, 256>}, {transform_indices = @transform_8, window_bounds = array<i64: 8, 256>}]} {
    %c0 = arith.constant 0 : index
    %c0_0 = arith.constant 0 : index
    %0 = vector.load %arg1[%c0, %c0_0] : memref<8x128xf32, #tpu.memory_space<vmem>>, vector<8x128xf32>
    %1 = arith.truncf %0 : vector<8x128xf32> to vector<8x128xbf16>
    %c0_1 = arith.constant 0 : index
    %c0_2 = arith.constant 0 : index
    %2 = vector.load %arg3[%c0_1, %c0_2] : memref<128x32xbf16, #tpu.memory_space<vmem>>, vector<128x32xbf16>
    %cst = arith.constant dense<0.000000e+00> : vector<8x32xf32>
    %3 = tpu.matmul %1, %2, %cst {dimension_numbers = #tpu.dot_dimension_numbers<[1], [0], [0], [1], [0, 0, 1, 1], [], []>} : vector<8x128xbf16>, vector<128x32xbf16>, vector<8x32xf32> -> vector<8x32xf32>
    %c0_3 = arith.constant 0 : index
    %c0_4 = arith.constant 0 : index
    %4 = vector.load %arg4[%c0_3, %c0_4] : memref<1x32xf32, #tpu.memory_space<vmem>>, vector<1x32xf32>
    %5 = vector.broadcast %4 : vector<1x32xf32> to vector<8x32xf32>
    %6 = arith.addf %3, %5 : vector<8x32xf32>
    %cst_5 = arith.constant 0.000000e+00 : f32
    %7 = vector.broadcast %cst_5 : f32 to vector<8x32xf32>
    %8 = arith.maximumf %6, %7 : vector<8x32xf32>
    %9 = arith.truncf %8 : vector<8x32xf32> to vector<8x32xbf16>
    %c0_6 = arith.constant 0 : index
    %c0_7 = arith.constant 0 : index
    %10 = vector.load %arg5[%c0_6, %c0_7] : memref<32x256xbf16, #tpu.memory_space<vmem>>, vector<32x256xbf16>
    %cst_8 = arith.constant dense<0.000000e+00> : vector<8x256xf32>
    %11 = tpu.matmul %9, %10, %cst_8 {dimension_numbers = #tpu.dot_dimension_numbers<[1], [0], [0], [1], [0, 0, 1, 1], [], []>} : vector<8x32xbf16>, vector<32x256xbf16>, vector<8x256xf32> -> vector<8x256xf32>
    %c0_9 = arith.constant 0 : index
    %c0_10 = arith.constant 0 : index
    %12 = vector.load %arg6[%c0_9, %c0_10] : memref<1x256xf32, #tpu.memory_space<vmem>>, vector<1x256xf32>
    %13 = vector.broadcast %12 : vector<1x256xf32> to vector<8x256xf32>
    %14 = arith.addf %11, %13 : vector<8x256xf32>
    %cst_11 = arith.constant 0.000000e+00 : f32
    %15 = vector.broadcast %cst_11 : f32 to vector<8x256xf32>
    %16 = arith.maximumf %14, %15 : vector<8x256xf32>
    %17 = arith.truncf %16 : vector<8x256xf32> to vector<8x256xbf16>
    %c0_12 = arith.constant 0 : index
    %c0_13 = arith.constant 0 : index
    %18 = vector.load %arg7[%c0_12, %c0_13] : memref<256x256xbf16, #tpu.memory_space<vmem>>, vector<256x256xbf16>
    %cst_14 = arith.constant dense<0.000000e+00> : vector<8x256xf32>
    %19 = tpu.matmul %17, %18, %cst_14 {dimension_numbers = #tpu.dot_dimension_numbers<[1], [0], [0], [1], [0, 0, 1, 1], [], []>} : vector<8x256xbf16>, vector<256x256xbf16>, vector<8x256xf32> -> vector<8x256xf32>
    %c0_15 = arith.constant 0 : index
    %c0_16 = arith.constant 0 : index
    %20 = vector.load %arg8[%c0_15, %c0_16] : memref<1x256xf32, #tpu.memory_space<vmem>>, vector<1x256xf32>
    %21 = vector.broadcast %20 : vector<1x256xf32> to vector<8x256xf32>
    %22 = arith.addf %19, %21 : vector<8x256xf32>
    %c0_17 = arith.constant 0 : index
    %c0_18 = arith.constant 0 : index
    %23 = vector.load %arg2[%c0_17, %c0_18] : memref<8x128xf32, #tpu.memory_space<vmem>>, vector<8x1xf32>
    %cst_19 = arith.constant 0.000000e+00 : f32
    %24 = vector.broadcast %cst_19 : f32 to vector<8x256xf32>
    %25 = arith.subf %24, %22 : vector<8x256xf32>
    %26 = math.exp %25 : vector<8x256xf32>
    %cst_20 = arith.constant 1.000000e+00 : f32
    %27 = vector.broadcast %cst_20 : f32 to vector<8x256xf32>
    %28 = arith.addf %27, %26 : vector<8x256xf32>
    %29 = tpu.reciprocal %28 {approx = true} : vector<8x256xf32> -> vector<8x256xf32>
    %30 = vector.broadcast %23 : vector<8x1xf32> to vector<8x256xf32>
    %31 = arith.mulf %29, %30 : vector<8x256xf32>
    %c0_21 = arith.constant 0 : index
    %c0_22 = arith.constant 0 : index
    %32 = vector.load %arg9[%c0_21, %c0_22] : memref<8x256xf32, #tpu.memory_space<vmem>>, vector<8x256xf32>
    tpu.vector_store %arg9[%c0_21, %c0_22], %31 {strides = array<i32>} : memref<8x256xf32, #tpu.memory_space<vmem>>, vector<8x256xf32>,
    return
  }
  func.func @transform_0(%arg0: i32) -> (i32, i32) {
    %c0_i32 = arith.constant 0 : i32
    %c0_i32_0 = arith.constant 0 : i32
    return %arg0, %c0_i32 : i32, i32
  }
  func.func @transform_1(%arg0: i32) -> (i32, i32) {
    %c0_i32 = arith.constant 0 : i32
    %c0_i32_0 = arith.constant 0 : i32
    return %arg0, %c0_i32 : i32, i32
  }
  func.func @transform_2(%arg0: i32) -> (i32, i32) {
    %c0_i32 = arith.constant 0 : i32
    %c0_i32_0 = arith.constant 0 : i32
    %c0_i32_1 = arith.constant 0 : i32
    return %c0_i32, %c0_i32_0 : i32, i32
  }
  func.func @transform_3(%arg0: i32) -> (i32, i32) {
    %c0_i32 = arith.constant 0 : i32
    %c0_i32_0 = arith.constant 0 : i32
    %c0_i32_1 = arith.constant 0 : i32
    return %c0_i32, %c0_i32_0 : i32, i32
  }
  func.func @transform_4(%arg0: i32) -> (i32, i32) {
    %c0_i32 = arith.constant 0 : i32
    %c0_i32_0 = arith.constant 0 : i32
    %c0_i32_1 = arith.constant 0 : i32
    return %c0_i32, %c0_i32_0 : i32, i32
  }
  func.func @transform_5(%arg0: i32) -> (i32, i32) {
    %c0_i32 = arith.constant 0 : i32
    %c0_i32_0 = arith.constant 0 : i32
    %c0_i32_1 = arith.constant 0 : i32
    return %c0_i32, %c0_i32_0 : i32, i32
  }
  func.func @transform_6(%arg0: i32) -> (i32, i32) {
    %c0_i32 = arith.constant 0 : i32
    %c0_i32_0 = arith.constant 0 : i32
    %c0_i32_1 = arith.constant 0 : i32
    return %c0_i32, %c0_i32_0 : i32, i32
  }
  func.func @transform_7(%arg0: i32) -> (i32, i32) {
    %c0_i32 = arith.constant 0 : i32
    %c0_i32_0 = arith.constant 0 : i32
    %c0_i32_1 = arith.constant 0 : i32
    return %c0_i32, %c0_i32_0 : i32, i32
  }
  func.func @transform_8(%arg0: i32) -> (i32, i32) {
    %c0_i32 = arith.constant 0 : i32
    %c0_i32_0 = arith.constant 0 : i32
    return %arg0, %c0_i32 : i32, i32
  }
}

</mosaic_0001>

<llo_original>
// kernel: smvae_beta_forward.4
$region0: #{smvae_beta_forward.4}
  #allocation0 [shape = 'u32[]', space=smem, size = 0x4, offset = 0x4, fixed_abs, tag = 'smem constant byte address 0x4 - core index']
  #allocation1 [shape = 'u32[144,128]{1,0:T(1,128)}', space=vmem, size = 0x12000, scoped, tag = 'internal scratch']
  %s0 = inlined_call_operand.vmem [shape: f32[8,256], index: 0, kind: input, shape index: {}]
  %s1 = inlined_call_operand.vmem [shape: f32[8,128], index: 1, kind: input, shape index: {}]
  %s2 = inlined_call_operand.vmem [shape: bf16[256,256], index: 2, kind: input, shape index: {}]
  %s3 = inlined_call_operand.vmem [shape: f32[1,256], index: 3, kind: input, shape index: {}]
  %s4 = inlined_call_operand.vmem [shape: bf16[256,32], index: 4, kind: input, shape index: {}]
  %s5 = inlined_call_operand.vmem [shape: f32[1,32], index: 5, kind: input, shape index: {}]
  %s6 = inlined_call_operand.vmem [shape: bf16[32,256], index: 6, kind: input, shape index: {}]
  %s7 = inlined_call_operand.vmem [shape: f32[1,256], index: 7, kind: input, shape index: {}]
  %s8 = inlined_call_operand.vmem [shape: f32[8,512], index: 8, kind: output, shape index: {0}]
  %s9 = inlined_call_operand.vmem [shape: f32[8,128], index: 9, kind: output, shape index: {1}]
  %10 = xla_tuple %s8, %s9
  %s11 = sld [smem:[#allocation0]]
  $region50: #{smvae_beta_forward.4} parent=0
    _
  %s13 = ssub.s32 1, %s11
  %s14 = scalar_select 0, %s13, %s11
  // Predicated region
  $region2: #{smvae_beta_forward.4} parent=0 // pred_check
    _
  $region3: #{smvae_beta_forward.4} parent=0 // pred_check_branch
    %16 = sbr.rel (0) target = $region5
  $region4: #{smvae_beta_forward.4} parent=0 // pred_region
    _
  $region5: #{smvae_beta_forward.4} parent=0 // pred_fallthru
    _
  // Predicated region
  $region6: #{smvae_beta_forward.4} parent=0 // pred_check
    _
  $region7: #{smvae_beta_forward.4} parent=0 // pred_check_branch
    %18 = sbr.rel (0) target = $region9
  $region8: #{smvae_beta_forward.4} parent=0 // pred_region
    _
  $region9: #{smvae_beta_forward.4} parent=0 // pred_fallthru
    _
  // Predicated region
  $region10: #{smvae_beta_forward.4} parent=0 // pred_check
    _
  $region11: #{smvae_beta_forward.4} parent=0 // pred_check_branch
    %20 = sbr.rel (0) target = $region13
  $region12: #{smvae_beta_forward.4} parent=0 // pred_region
    _
  $region13: #{smvae_beta_forward.4} parent=0 // pred_fallthru
    _
  // Predicated region
  $region14: #{smvae_beta_forward.4} parent=0 // pred_check
    _
  $region15: #{smvae_beta_forward.4} parent=0 // pred_check_branch
    %22 = sbr.rel (0) target = $region17
  $region16: #{smvae_beta_forward.4} parent=0 // pred_region
    _
  $region17: #{smvae_beta_forward.4} parent=0 // pred_fallthru
    _
  // Predicated region
  $region18: #{smvae_beta_forward.4} parent=0 // pred_check
    _
  $region19: #{smvae_beta_forward.4} parent=0 // pred_check_branch
    %24 = sbr.rel (0) target = $region21
  $region20: #{smvae_beta_forward.4} parent=0 // pred_region
    _
  $region21: #{smvae_beta_forward.4} parent=0 // pred_fallthru
    _
  // Predicated region
  $region22: #{smvae_beta_forward.4} parent=0 // pred_check
    _
  $region23: #{smvae_beta_forward.4} parent=0 // pred_check_branch
    %26 = sbr.rel (0) target = $region25
  $region24: #{smvae_beta_forward.4} parent=0 // pred_region
    _
  $region25: #{smvae_beta_forward.4} parent=0 // pred_fallthru
    _
  // Predicated region
  $region26: #{smvae_beta_forward.4} parent=0 // pred_check
    _
  $region27: #{smvae_beta_forward.4} parent=0 // pred_check_branch
    %28 = sbr.rel (0) target = $region29
  $region28: #{smvae_beta_forward.4} parent=0 // pred_region
    _
  $region29: #{smvae_beta_forward.4} parent=0 // pred_fallthru
    _
  // Predicated region
  $region30: #{smvae_beta_forward.4} parent=0 // pred_check
    _
  $region31: #{smvae_beta_forward.4} parent=0 // pred_check_branch
    %30 = sbr.rel (0) target = $region33
  $region32: #{smvae_beta_forward.4} parent=0 // pred_region
    _
  $region33: #{smvae_beta_forward.4} parent=0 // pred_fallthru
    _
  %v32 = vld [vmem:[%s0] sm:$0xff]
  %v33 = vld [vmem:[%s0 + $0x8] sm:$0xff]
  %v34 = vpack.c.bf16 %v32, %v32
  %v35 = vpack.c.bf16 %v33, %v33
  %v36 = vld [vmem:[%s2] sm:$0xff]
  %v37 = vld [vmem:[%s2 + $0x8] sm:$0xff]
  %v38 = vld [vmem:[%s2 + $0x10] sm:$0xff]
  %v39 = vld [vmem:[%s2 + $0x18] sm:$0xff]
  %v40 = vld [vmem:[%s2 + $0x20] sm:$0xff]
  %v41 = vld [vmem:[%s2 + $0x28] sm:$0xff]
  %v42 = vld [vmem:[%s2 + $0x30] sm:$0xff]
  %v43 = vld [vmem:[%s2 + $0x38] sm:$0xff]
  %v44 = vld [vmem:[%s2 + $0x40] sm:$0xff]
  %v45 = vld [vmem:[%s2 + $0x48] sm:$0xff]
  %v46 = vld [vmem:[%s2 + $0x50] sm:$0xff]
  %v47 = vld [vmem:[%s2 + $0x58] sm:$0xff]
  %v48 = vld [vmem:[%s2 + $0x60] sm:$0xff]
  %v49 = vld [vmem:[%s2 + $0x68] sm:$0xff]
  %v50 = vld [vmem:[%s2 + $0x70] sm:$0xff]
  %v51 = vld [vmem:[%s2 + $0x78] sm:$0xff]
  %v52 = vld [vmem:[%s2 + $0x80] sm:$0xff]
  %v53 = vld [vmem:[%s2 + $0x88] sm:$0xff]
  %v54 = vld [vmem:[%s2 + $0x90] sm:$0xff]
  %v55 = vld [vmem:[%s2 + $0x98] sm:$0xff]
  %v56 = vld [vmem:[%s2 + $0xa0] sm:$0xff]
  %v57 = vld [vmem:[%s2 + $0xa8] sm:$0xff]
  %v58 = vld [vmem:[%s2 + $0xb0] sm:$0xff]
  %v59 = vld [vmem:[%s2 + $0xb8] sm:$0xff]
  %v60 = vld [vmem:[%s2 + $0xc0] sm:$0xff]
  %v61 = vld [vmem:[%s2 + $0xc8] sm:$0xff]
  %v62 = vld [vmem:[%s2 + $0xd0] sm:$0xff]
  %v63 = vld [vmem:[%s2 + $0xd8] sm:$0xff]
  %v64 = vld [vmem:[%s2 + $0xe0] sm:$0xff]
  %v65 = vld [vmem:[%s2 + $0xe8] sm:$0xff]
  %v66 = vld [vmem:[%s2 + $0xf0] sm:$0xff]
  %v67 = vld [vmem:[%s2 + $0xf8] sm:$0xff]
  %v68 = vld [vmem:[%s3] sm:$0x3]
  %v70 = vlaneseq
  %v71 = vshrl.u32 %v70, 7
  %v72 = vsub.s32 0, %v71
  %v73 = vrot.slane %v68, %v72
  %v74 = vlaneseq
  %v75 = vshrl.u32 %v74, 7
  %v76 = vsub.s32 1, %v75
  %v77 = vrot.slane %v68, %v76
  %v112 = vunpack.c.l.b16 %v36
  %v113 = vunpack.c.h.b16 %v36
  %v114 = vunpack.c.l.b16 %v37
  %v115 = vunpack.c.h.b16 %v37
  %v116 = vunpack.c.l.b16 %v38
  %v117 = vunpack.c.h.b16 %v38
  %v118 = vunpack.c.l.b16 %v39
  %v119 = vunpack.c.h.b16 %v39
  %v120 = vunpack.c.l.b16 %v40
  %v121 = vunpack.c.h.b16 %v40
  %v122 = vunpack.c.l.b16 %v41
  %v123 = vunpack.c.h.b16 %v41
  %v124 = vunpack.c.l.b16 %v42
  %v125 = vunpack.c.h.b16 %v42
  %v126 = vunpack.c.l.b16 %v43
  %v127 = vunpack.c.h.b16 %v43
  %v128 = vunpack.c.l.b16 %v44
  %v129 = vunpack.c.h.b16 %v44
  %v130 = vunpack.c.l.b16 %v45
  %v131 = vunpack.c.h.b16 %v45
  %v132 = vunpack.c.l.b16 %v46
  %v133 = vunpack.c.h.b16 %v46
  %v134 = vunpack.c.l.b16 %v47
  %v135 = vunpack.c.h.b16 %v47
  %v136 = vunpack.c.l.b16 %v48
  %v137 = vunpack.c.h.b16 %v48
  %v138 = vunpack.c.l.b16 %v49
  %v139 = vunpack.c.h.b16 %v49
  %v140 = vunpack.c.l.b16 %v50
  %v141 = vunpack.c.h.b16 %v50
  %v142 = vunpack.c.l.b16 %v51
  %v143 = vunpack.c.h.b16 %v51
  %v144 = vunpack.c.l.b16 %v52
  %v145 = vunpack.c.h.b16 %v52
  %v146 = vunpack.c.l.b16 %v53
  %v147 = vunpack.c.h.b16 %v53
  %v148 = vunpack.c.l.b16 %v54
  %v149 = vunpack.c.h.b16 %v54
  %v150 = vunpack.c.l.b16 %v55
  %v151 = vunpack.c.h.b16 %v55
  %v152 = vunpack.c.l.b16 %v56
  %v153 = vunpack.c.h.b16 %v56
  %v154 = vunpack.c.l.b16 %v57
  %v155 = vunpack.c.h.b16 %v57
  %v156 = vunpack.c.l.b16 %v58
  %v157 = vunpack.c.h.b16 %v58
  %v158 = vunpack.c.l.b16 %v59
  %v159 = vunpack.c.h.b16 %v59
  %v160 = vunpack.c.l.b16 %v60
  %v161 = vunpack.c.h.b16 %v60
  %v162 = vunpack.c.l.b16 %v61
  %v163 = vunpack.c.h.b16 %v61
  %v164 = vunpack.c.l.b16 %v62
  %v165 = vunpack.c.h.b16 %v62
  %v166 = vunpack.c.l.b16 %v63
  %v167 = vunpack.c.h.b16 %v63
  %v168 = vunpack.c.l.b16 %v64
  %v169 = vunpack.c.h.b16 %v64
  %v170 = vunpack.c.l.b16 %v65
  %v171 = vunpack.c.h.b16 %v65
  %v172 = vunpack.c.l.b16 %v66
  %v173 = vunpack.c.h.b16 %v66
  %v174 = vunpack.c.l.b16 %v67
  %v175 = vunpack.c.h.b16 %v67
  %v176 = vpack.c.b16 %v114, %v112
  %v177 = vpack.c.b16 %v115, %v113
  %v178 = vpack.c.b16 %v118, %v116
  %v179 = vpack.c.b16 %v119, %v117
  %v180 = vpack.c.b16 %v122, %v120
  %v181 = vpack.c.b16 %v123, %v121
  %v182 = vpack.c.b16 %v126, %v124
  %v183 = vpack.c.b16 %v127, %v125
  %v184 = vpack.c.b16 %v130, %v128
  %v185 = vpack.c.b16 %v131, %v129
  %v186 = vpack.c.b16 %v134, %v132
  %v187 = vpack.c.b16 %v135, %v133
  %v188 = vpack.c.b16 %v138, %v136
  %v189 = vpack.c.b16 %v139, %v137
  %v190 = vpack.c.b16 %v142, %v140
  %v191 = vpack.c.b16 %v143, %v141
  %v192 = vpack.c.b16 %v146, %v144
  %v193 = vpack.c.b16 %v147, %v145
  %v194 = vpack.c.b16 %v150, %v148
  %v195 = vpack.c.b16 %v151, %v149
  %v196 = vpack.c.b16 %v154, %v152
  %v197 = vpack.c.b16 %v155, %v153
  %v198 = vpack.c.b16 %v158, %v156
  %v199 = vpack.c.b16 %v159, %v157
  %v200 = vpack.c.b16 %v162, %v160
  %v201 = vpack.c.b16 %v163, %v161
  %v202 = vpack.c.b16 %v166, %v164
  %v203 = vpack.c.b16 %v167, %v165
  %v204 = vpack.c.b16 %v170, %v168
  %v205 = vpack.c.b16 %v171, %v169
  %v206 = vpack.c.b16 %v174, %v172
  %v207 = vpack.c.b16 %v175, %v173
  %240 = vmatprep.subr.bf16.mxu0 %v177
  %241 = vmatpush1.bf16.msra.mxu0 %v176
  %242 = vmatprep.subr.bf16.mxu0 %v179
  %243 = vmatpush1.bf16.msra.mxu0 %v178
  %244 = vmatprep.subr.bf16.mxu0 %v181
  %245 = vmatpush1.bf16.msra.mxu0 %v180
  %246 = vmatprep.subr.bf16.mxu0 %v183
  %247 = vmatpush1.bf16.msra.mxu0 %v182
  %248 = vmatprep.subr.bf16.mxu0 %v185
  %249 = vmatpush1.bf16.msra.mxu0 %v184
  %250 = vmatprep.subr.bf16.mxu0 %v187
  %251 = vmatpush1.bf16.msra.mxu0 %v186
  %252 = vmatprep.subr.bf16.mxu0 %v189
  %253 = vmatpush1.bf16.msra.mxu0 %v188
  %254 = vmatprep.subr.bf16.mxu0 %v191
  %255 = vmatpush1.bf16.msra.mxu0 %v190
  %256 = vmatprep.subr.bf16.mxu0 %v193
  %257 = vmatpush1.bf16.msra.mxu0 %v192
  %258 = vmatprep.subr.bf16.mxu0 %v195
  %259 = vmatpush1.bf16.msra.mxu0 %v194
  %260 = vmatprep.subr.bf16.mxu0 %v197
  %261 = vmatpush1.bf16.msra.mxu0 %v196
  %262 = vmatprep.subr.bf16.mxu0 %v199
  %263 = vmatpush1.bf16.msra.mxu0 %v198
  %264 = vmatprep.subr.bf16.mxu0 %v201
  %265 = vmatpush1.bf16.msra.mxu0 %v200
  %266 = vmatprep.subr.bf16.mxu0 %v203
  %267 = vmatpush1.bf16.msra.mxu0 %v202
  %268 = vmatprep.subr.bf16.mxu0 %v205
  %269 = vmatpush1.bf16.msra.mxu0 %v204
  %270 = vmatprep.subr.bf16.mxu0 %v207
  %271 = vmatpush1.bf16.msra.mxu0 %v206
  %272 = vmatprep.mubr.bf16.mxu0 %v35
  %273 = vmatmul.mubr.bf16.gmra.mrb[0].mxu0 %v34
  %v274 = vpop.f32.mrb[0].mxu0
  %v275 = vadd.f32 %v73, %v274
  %v276 = vpop.f32.mrb[0].mxu0
  %v277 = vadd.f32 %v77, %v276
  %v278 = vpop.f32.mrb[0].mxu0
  %v279 = vpop.f32.mrb[0].mxu0
  %280 = vdwg.mxu0
  %v281 = vmax.f32 %v275, 0.0
  %v282 = vmax.f32 %v277, 0.0
  %v283 = vpack.c.bf16 %v281, %v281
  %v284 = vpack.c.bf16 %v282, %v282
  %v285 = vld [vmem:[%s4] sm:$0xf]
  %v286 = vld [vmem:[%s4 + $0x4] sm:$0xf]
  %v287 = vld [vmem:[%s4 + $0x8] sm:$0xf]
  %v288 = vld [vmem:[%s4 + $0xc] sm:$0xf]
  %v289 = vld [vmem:[%s4 + $0x10] sm:$0xf]
  %v290 = vld [vmem:[%s4 + $0x14] sm:$0xf]
  %v291 = vld [vmem:[%s4 + $0x18] sm:$0xf]
  %v292 = vld [vmem:[%s4 + $0x1c] sm:$0xf]
  %v293 = vld [vmem:[%s4 + $0x20] sm:$0xf]
  %v294 = vld [vmem:[%s4 + $0x24] sm:$0xf]
  %v295 = vld [vmem:[%s4 + $0x28] sm:$0xf]
  %v296 = vld [vmem:[%s4 + $0x2c] sm:$0xf]
  %v297 = vld [vmem:[%s4 + $0x30] sm:$0xf]
  %v298 = vld [vmem:[%s4 + $0x34] sm:$0xf]
  %v299 = vld [vmem:[%s4 + $0x38] sm:$0xf]
  %v300 = vld [vmem:[%s4 + $0x3c] sm:$0xf]
  %v301 = vld [vmem:[%s4 + $0x40] sm:$0xf]
  %v302 = vld [vmem:[%s4 + $0x44] sm:$0xf]
  %v303 = vld [vmem:[%s4 + $0x48] sm:$0xf]
  %v304 = vld [vmem:[%s4 + $0x4c] sm:$0xf]
  %v305 = vld [vmem:[%s4 + $0x50] sm:$0xf]
  %v306 = vld [vmem:[%s4 + $0x54] sm:$0xf]
  %v307 = vld [vmem:[%s4 + $0x58] sm:$0xf]
  %v308 = vld [vmem:[%s4 + $0x5c] sm:$0xf]
  %v309 = vld [vmem:[%s4 + $0x60] sm:$0xf]
  %v310 = vld [vmem:[%s4 + $0x64] sm:$0xf]
  %v311 = vld [vmem:[%s4 + $0x68] sm:$0xf]
  %v312 = vld [vmem:[%s4 + $0x6c] sm:$0xf]
  %v313 = vld [vmem:[%s4 + $0x70] sm:$0xf]
  %v314 = vld [vmem:[%s4 + $0x74] sm:$0xf]
  %v315 = vld [vmem:[%s4 + $0x78] sm:$0xf]
  %v316 = vld [vmem:[%s4 + $0x7c] sm:$0xf]
  %v317 = vld [vmem:[%s5] sm:$0x1]
  %v319 = vlaneseq
  %v320 = vshrl.u32 %v319, 7
  %v321 = vsub.s32 0, %v320
  %v322 = vrot.slane %v317, %v321
  %v356 = vunpack.c.l.b16 %v285
  %v357 = vunpack.c.l.b16 %v286
  %v358 = vunpack.c.l.b16 %v287
  %v359 = vunpack.c.l.b16 %v288
  %v360 = vunpack.c.l.b16 %v289
  %v361 = vunpack.c.l.b16 %v290
  %v362 = vunpack.c.l.b16 %v291
  %v363 = vunpack.c.l.b16 %v292
  %v364 = vunpack.c.l.b16 %v293
  %v365 = vunpack.c.l.b16 %v294
  %v366 = vunpack.c.l.b16 %v295
  %v367 = vunpack.c.l.b16 %v296
  %v368 = vunpack.c.l.b16 %v297
  %v369 = vunpack.c.l.b16 %v298
  %v370 = vunpack.c.l.b16 %v299
  %v371 = vunpack.c.l.b16 %v300
  %v372 = vunpack.c.l.b16 %v301
  %v373 = vunpack.c.l.b16 %v302
  %v374 = vunpack.c.l.b16 %v303
  %v375 = vunpack.c.l.b16 %v304
  %v376 = vunpack.c.l.b16 %v305
  %v377 = vunpack.c.l.b16 %v306
  %v378 = vunpack.c.l.b16 %v307
  %v379 = vunpack.c.l.b16 %v308
  %v380 = vunpack.c.l.b16 %v309
  %v381 = vunpack.c.l.b16 %v310
  %v382 = vunpack.c.l.b16 %v311
  %v383 = vunpack.c.l.b16 %v312
  %v384 = vunpack.c.l.b16 %v313
  %v385 = vunpack.c.l.b16 %v314
  %v386 = vunpack.c.l.b16 %v315
  %v387 = vunpack.c.l.b16 %v316
  %v388 = vpack.c.b16 %v357, %v356
  %v389 = vpack.c.b16 %v359, %v358
  %v390 = vpack.c.b16 %v361, %v360
  %v391 = vpack.c.b16 %v363, %v362
  %v392 = vpack.c.b16 %v365, %v364
  %v393 = vpack.c.b16 %v367, %v366
  %v394 = vpack.c.b16 %v369, %v368
  %v395 = vpack.c.b16 %v371, %v370
  %v396 = vpack.c.b16 %v373, %v372
  %v397 = vpack.c.b16 %v375, %v374
  %v398 = vpack.c.b16 %v377, %v376
  %v399 = vpack.c.b16 %v379, %v378
  %v400 = vpack.c.b16 %v381, %v380
  %v401 = vpack.c.b16 %v383, %v382
  %v402 = vpack.c.b16 %v385, %v384
  %v403 = vpack.c.b16 %v387, %v386
  %420 = vmatprep.subr.bf16.mxu0 0
  %421 = vmatpush1.bf16.msra.mxu0 %v388
  %422 = vmatprep.subr.bf16.mxu0 0
  %423 = vmatpush1.bf16.msra.mxu0 %v389
  %424 = vmatprep.subr.bf16.mxu0 0
  %425 = vmatpush1.bf16.msra.mxu0 %v390
  %426 = vmatprep.subr.bf16.mxu0 0
  %427 = vmatpush1.bf16.msra.mxu0 %v391
  %428 = vmatprep.subr.bf16.mxu0 0
  %429 = vmatpush1.bf16.msra.mxu0 %v392
  %430 = vmatprep.subr.bf16.mxu0 0
  %431 = vmatpush1.bf16.msra.mxu0 %v393
  %432 = vmatprep.subr.bf16.mxu0 0
  %433 = vmatpush1.bf16.msra.mxu0 %v394
  %434 = vmatprep.subr.bf16.mxu0 0
  %435 = vmatpush1.bf16.msra.mxu0 %v395
  %436 = vmatprep.subr.bf16.mxu0 0
  %437 = vmatpush1.bf16.msra.mxu0 %v396
  %438 = vmatprep.subr.bf16.mxu0 0
  %439 = vmatpush1.bf16.msra.mxu0 %v397
  %440 = vmatprep.subr.bf16.mxu0 0
  %441 = vmatpush1.bf16.msra.mxu0 %v398
  %442 = vmatprep.subr.bf16.mxu0 0
  %443 = vmatpush1.bf16.msra.mxu0 %v399
  %444 = vmatprep.subr.bf16.mxu0 0
  %445 = vmatpush1.bf16.msra.mxu0 %v400
  %446 = vmatprep.subr.bf16.mxu0 0
  %447 = vmatpush1.bf16.msra.mxu0 %v401
  %448 = vmatprep.subr.bf16.mxu0 0
  %449 = vmatpush1.bf16.msra.mxu0 %v402
  %450 = vmatprep.subr.bf16.mxu0 0
  %451 = vmatpush1.bf16.msra.mxu0 %v403
  %452 = vmatprep.mubr.bf16.mxu0 %v284
  %453 = vmatmul.mubr.bf16.gmra.mrb[0].mxu0 %v283
  %v454 = vpop.f32.mrb[0].mxu0
  %v455 = vadd.f32 %v322, %v454
  %v456 = vpop.f32.mrb[0].mxu0
  %v457 = vpop.f32.mrb[0].mxu0
  %v458 = vpop.f32.mrb[0].mxu0
  %459 = vdwg.mxu0
  %v460 = vmax.f32 %v455, 0.0
  %v461 = vpack.c.bf16 %v460, %v460
  %v462 = vld [vmem:[%s6] sm:$0xff]
  %v463 = vld [vmem:[%s6 + $0x8] sm:$0xff]
  %v464 = vld [vmem:[%s6 + $0x10] sm:$0xff]
  %v465 = vld [vmem:[%s6 + $0x18] sm:$0xff]
  %v466 = vld [vmem:[%s7] sm:$0x3]
  %v468 = vlaneseq
  %v469 = vshrl.u32 %v468, 7
  %v470 = vsub.s32 0, %v469
  %v471 = vrot.slane %v466, %v470
  %v472 = vlaneseq
  %v473 = vshrl.u32 %v472, 7
  %v474 = vsub.s32 1, %v473
  %v475 = vrot.slane %v466, %v474
  %v482 = vunpack.c.l.b16 %v462
  %v483 = vunpack.c.h.b16 %v462
  %v484 = vunpack.c.l.b16 %v463
  %v485 = vunpack.c.h.b16 %v463
  %v486 = vunpack.c.l.b16 %v464
  %v487 = vunpack.c.h.b16 %v464
  %v488 = vunpack.c.l.b16 %v465
  %v489 = vunpack.c.h.b16 %v465
  %v490 = vpack.c.b16 %v484, %v482
  %v491 = vpack.c.b16 %v485, %v483
  %v492 = vpack.c.b16 %v488, %v486
  %v493 = vpack.c.b16 %v489, %v487
  %vm498 = vcmask 261120
  %v500 = vsel %vm498, %v461, 0
  %502 = vmatprep.subr.bf16.mxu0 %v491
  %503 = vmatpush1.bf16.msra.mxu0 %v490
  %504 = vmatprep.subr.bf16.mxu0 %v493
  %505 = vmatpush1.bf16.msra.mxu0 %v492
  %506 = vmatprep.subr.bf16.mxu0 0
  %507 = vmatpush1.bf16.msra.mxu0 0
  %508 = vmatprep.subr.bf16.mxu0 0
  %509 = vmatpush1.bf16.msra.mxu0 0
  %510 = vmatprep.subr.bf16.mxu0 0
  %511 = vmatpush1.bf16.msra.mxu0 0
  %512 = vmatprep.subr.bf16.mxu0 0
  %513 = vmatpush1.bf16.msra.mxu0 0
  %514 = vmatprep.subr.bf16.mxu0 0
  %515 = vmatpush1.bf16.msra.mxu0 0
  %516 = vmatprep.subr.bf16.mxu0 0
  %517 = vmatpush1.bf16.msra.mxu0 0
  %518 = vmatprep.subr.bf16.mxu0 0
  %519 = vmatpush1.bf16.msra.mxu0 0
  %520 = vmatprep.subr.bf16.mxu0 0
  %521 = vmatpush1.bf16.msra.mxu0 0
  %522 = vmatprep.subr.bf16.mxu0 0
  %523 = vmatpush1.bf16.msra.mxu0 0
  %524 = vmatprep.subr.bf16.mxu0 0
  %525 = vmatpush1.bf16.msra.mxu0 0
  %526 = vmatprep.subr.bf16.mxu0 0
  %527 = vmatpush1.bf16.msra.mxu0 0
  %528 = vmatprep.subr.bf16.mxu0 0
  %529 = vmatpush1.bf16.msra.mxu0 0
  %530 = vmatprep.subr.bf16.mxu0 0
  %531 = vmatpush1.bf16.msra.mxu0 0
  %532 = vmatprep.subr.bf16.mxu0 0
  %533 = vmatpush1.bf16.msra.mxu0 0
  %534 = vmatprep.mubr.bf16.mxu0 0
  %535 = vmatmul.mubr.bf16.gmra.mrb[0].mxu0 %v500
  %v536 = vpop.f32.mrb[0].mxu0
  %v537 = vadd.f32 %v471, %v536
  %v538 = vpop.f32.mrb[0].mxu0
  %v539 = vadd.f32 %v475, %v538
  %v540 = vpop.f32.mrb[0].mxu0
  %v541 = vpop.f32.mrb[0].mxu0
  %542 = vdwg.mxu0
  %v543 = vmul.f32 %v539, 0.5
  %v544 = vmul.f32 %v543, 1.442695
  %v545 = vpow.pop %v544
  %v546 = vsub.f32 0.0, %v537
  %v547 = vmul.f32 %v546, 1.442695
  %v548 = vpow.pop %v547
  %v549 = vadd.f32 %v548, 1.0
  %v550 = vrcp.pop %v549
  %v551 = vmul.f32 %v539, 1.442695
  %v552 = vpow.pop %v551
  %v553 = vmul.f32 %v550, %v552
  %v554 = vsub.f32 %v552, %v553
  %v555 = vld [vmem:[%s1] sm:$0xff]
  %v556 = vmul.f32 %v545, %v555
  %v557 = vadd.f32 %v537, %v556
  %558 = vst [vmem:[%s8] sm:$0xff] %v537
  %559 = vst [vmem:[%s8 + $0x8] sm:$0xff] %v545
  %560 = vst [vmem:[%s8 + $0x10] sm:$0xff] %v553
  %561 = vst [vmem:[%s8 + $0x18] sm:$0xff] %v554
  %562 = vst [vmem:[%s9] sm:$0xff] %v557
  // Predicated region
  $region34: #{smvae_beta_forward.4} parent=0 // pred_check
    _
  $region35: #{smvae_beta_forward.4} parent=0 // pred_check_branch
    %564 = sbr.rel (0) target = $region37
  $region36: #{smvae_beta_forward.4} parent=0 // pred_region
    _
  $region37: #{smvae_beta_forward.4} parent=0 // pred_fallthru
    _
  // Predicated region
  $region38: #{smvae_beta_forward.4} parent=0 // pred_check
    _
  $region39: #{smvae_beta_forward.4} parent=0 // pred_check_branch
    %566 = sbr.rel (0) target = $region41
  $region40: #{smvae_beta_forward.4} parent=0 // pred_region
    _
  $region41: #{smvae_beta_forward.4} parent=0 // pred_fallthru
    _
  // Predicated region
  $region42: #{smvae_beta_forward.4} parent=0 // pred_check
    _
  $region43: #{smvae_beta_forward.4} parent=0 // pred_check_branch
    %568 = sbr.rel (0) target = $region45
  $region44: #{smvae_beta_forward.4} parent=0 // pred_region
    _
  $region45: #{smvae_beta_forward.4} parent=0 // pred_fallthru
    _
  // Predicated region
  $region46: #{smvae_beta_forward.4} parent=0 // pred_check
    _
  $region47: #{smvae_beta_forward.4} parent=0 // pred_check_branch
    %570 = sbr.rel (0) target = $region49
  $region48: #{smvae_beta_forward.4} parent=0 // pred_region
    _
  $region49: #{smvae_beta_forward.4} parent=0 // pred_fallthru
    _

// kernel: smvae_beta_forward.5
$region0: #{smvae_beta_forward.5}
  #allocation0 [shape = 'u32[]', space=smem, size = 0x4, offset = 0x4, fixed_abs, tag = 'smem constant byte address 0x4 - core index']
  #allocation1 [shape = 'u32[144,128]{1,0:T(1,128)}', space=vmem, size = 0x12000, scoped, tag = 'internal scratch']
  %s0 = inlined_call_operand.vmem [shape: f32[8,128], index: 0, kind: input, shape index: {}]
  %s1 = inlined_call_operand.vmem [shape: f32[8,128], index: 1, kind: input, shape index: {}]
  %s2 = inlined_call_operand.vmem [shape: bf16[128,32], index: 2, kind: input, shape index: {}]
  %s3 = inlined_call_operand.vmem [shape: f32[1,32], index: 3, kind: input, shape index: {}]
  %s4 = inlined_call_operand.vmem [shape: bf16[32,256], index: 4, kind: input, shape index: {}]
  %s5 = inlined_call_operand.vmem [shape: f32[1,256], index: 5, kind: input, shape index: {}]
  %s6 = inlined_call_operand.vmem [shape: bf16[256,256], index: 6, kind: input, shape index: {}]
  %s7 = inlined_call_operand.vmem [shape: f32[1,256], index: 7, kind: input, shape index: {}]
  %s8 = inlined_call_operand.vmem [shape: f32[8,256], index: 8, kind: output, shape index: {}]
  %s9 = sld [smem:[#allocation0]]
  $region42: #{smvae_beta_forward.5} parent=0
    _
  %s11 = ssub.s32 1, %s9
  %s12 = scalar_select 0, %s11, %s9
  // Predicated region
  $region2: #{smvae_beta_forward.5} parent=0 // pred_check
    _
  $region3: #{smvae_beta_forward.5} parent=0 // pred_check_branch
    %14 = sbr.rel (0) target = $region5
  $region4: #{smvae_beta_forward.5} parent=0 // pred_region
    _
  $region5: #{smvae_beta_forward.5} parent=0 // pred_fallthru
    _
  // Predicated region
  $region6: #{smvae_beta_forward.5} parent=0 // pred_check
    _
  $region7: #{smvae_beta_forward.5} parent=0 // pred_check_branch
    %16 = sbr.rel (0) target = $region9
  $region8: #{smvae_beta_forward.5} parent=0 // pred_region
    _
  $region9: #{smvae_beta_forward.5} parent=0 // pred_fallthru
    _
  // Predicated region
  $region10: #{smvae_beta_forward.5} parent=0 // pred_check
    _
  $region11: #{smvae_beta_forward.5} parent=0 // pred_check_branch
    %18 = sbr.rel (0) target = $region13
  $region12: #{smvae_beta_forward.5} parent=0 // pred_region
    _
  $region13: #{smvae_beta_forward.5} parent=0 // pred_fallthru
    _
  // Predicated region
  $region14: #{smvae_beta_forward.5} parent=0 // pred_check
    _
  $region15: #{smvae_beta_forward.5} parent=0 // pred_check_branch
    %20 = sbr.rel (0) target = $region17
  $region16: #{smvae_beta_forward.5} parent=0 // pred_region
    _
  $region17: #{smvae_beta_forward.5} parent=0 // pred_fallthru
    _
  // Predicated region
  $region18: #{smvae_beta_forward.5} parent=0 // pred_check
    _
  $region19: #{smvae_beta_forward.5} parent=0 // pred_check_branch
    %22 = sbr.rel (0) target = $region21
  $region20: #{smvae_beta_forward.5} parent=0 // pred_region
    _
  $region21: #{smvae_beta_forward.5} parent=0 // pred_fallthru
    _
  // Predicated region
  $region22: #{smvae_beta_forward.5} parent=0 // pred_check
    _
  $region23: #{smvae_beta_forward.5} parent=0 // pred_check_branch
    %24 = sbr.rel (0) target = $region25
  $region24: #{smvae_beta_forward.5} parent=0 // pred_region
    _
  $region25: #{smvae_beta_forward.5} parent=0 // pred_fallthru
    _
  // Predicated region
  $region26: #{smvae_beta_forward.5} parent=0 // pred_check
    _
  $region27: #{smvae_beta_forward.5} parent=0 // pred_check_branch
    %26 = sbr.rel (0) target = $region29
  $region28: #{smvae_beta_forward.5} parent=0 // pred_region
    _
  $region29: #{smvae_beta_forward.5} parent=0 // pred_fallthru
    _
  // Predicated region
  $region30: #{smvae_beta_forward.5} parent=0 // pred_check
    _
  $region31: #{smvae_beta_forward.5} parent=0 // pred_check_branch
    %28 = sbr.rel (0) target = $region33
  $region32: #{smvae_beta_forward.5} parent=0 // pred_region
    _
  $region33: #{smvae_beta_forward.5} parent=0 // pred_fallthru
    _
  %v30 = vld [vmem:[%s0] sm:$0xff]
  %v31 = vpack.c.bf16 %v30, %v30
  %v32 = vld [vmem:[%s2] sm:$0xf]
  %v33 = vld [vmem:[%s2 + $0x4] sm:$0xf]
  %v34 = vld [vmem:[%s2 + $0x8] sm:$0xf]
  %v35 = vld [vmem:[%s2 + $0xc] sm:$0xf]
  %v36 = vld [vmem:[%s2 + $0x10] sm:$0xf]
  %v37 = vld [vmem:[%s2 + $0x14] sm:$0xf]
  %v38 = vld [vmem:[%s2 + $0x18] sm:$0xf]
  %v39 = vld [vmem:[%s2 + $0x1c] sm:$0xf]
  %v40 = vld [vmem:[%s2 + $0x20] sm:$0xf]
  %v41 = vld [vmem:[%s2 + $0x24] sm:$0xf]
  %v42 = vld [vmem:[%s2 + $0x28] sm:$0xf]
  %v43 = vld [vmem:[%s2 + $0x2c] sm:$0xf]
  %v44 = vld [vmem:[%s2 + $0x30] sm:$0xf]
  %v45 = vld [vmem:[%s2 + $0x34] sm:$0xf]
  %v46 = vld [vmem:[%s2 + $0x38] sm:$0xf]
  %v47 = vld [vmem:[%s2 + $0x3c] sm:$0xf]
  %v48 = vld [vmem:[%s3] sm:$0x1]
  %v50 = vlaneseq
  %v51 = vshrl.u32 %v50, 7
  %v52 = vsub.s32 0, %v51
  %v53 = vrot.slane %v48, %v52
  %v71 = vunpack.c.l.b16 %v32
  %v72 = vunpack.c.l.b16 %v33
  %v73 = vunpack.c.l.b16 %v34
  %v74 = vunpack.c.l.b16 %v35
  %v75 = vunpack.c.l.b16 %v36
  %v76 = vunpack.c.l.b16 %v37
  %v77 = vunpack.c.l.b16 %v38
  %v78 = vunpack.c.l.b16 %v39
  %v79 = vunpack.c.l.b16 %v40
  %v80 = vunpack.c.l.b16 %v41
  %v81 = vunpack.c.l.b16 %v42
  %v82 = vunpack.c.l.b16 %v43
  %v83 = vunpack.c.l.b16 %v44
  %v84 = vunpack.c.l.b16 %v45
  %v85 = vunpack.c.l.b16 %v46
  %v86 = vunpack.c.l.b16 %v47
  %v87 = vpack.c.b16 %v72, %v71
  %v88 = vpack.c.b16 %v74, %v73
  %v89 = vpack.c.b16 %v76, %v75
  %v90 = vpack.c.b16 %v78, %v77
  %v91 = vpack.c.b16 %v80, %v79
  %v92 = vpack.c.b16 %v82, %v81
  %v93 = vpack.c.b16 %v84, %v83
  %v94 = vpack.c.b16 %v86, %v85
  %103 = vmatprep.subr.bf16.mxu0 0
  %104 = vmatpush1.bf16.msra.mxu0 %v87
  %105 = vmatprep.subr.bf16.mxu0 0
  %106 = vmatpush1.bf16.msra.mxu0 %v88
  %107 = vmatprep.subr.bf16.mxu0 0
  %108 = vmatpush1.bf16.msra.mxu0 %v89
  %109 = vmatprep.subr.bf16.mxu0 0
  %110 = vmatpush1.bf16.msra.mxu0 %v90
  %111 = vmatprep.subr.bf16.mxu0 0
  %112 = vmatpush1.bf16.msra.mxu0 %v91
  %113 = vmatprep.subr.bf16.mxu0 0
  %114 = vmatpush1.bf16.msra.mxu0 %v92
  %115 = vmatprep.subr.bf16.mxu0 0
  %116 = vmatpush1.bf16.msra.mxu0 %v93
  %117 = vmatprep.subr.bf16.mxu0 0
  %118 = vmatpush1.bf16.msra.mxu0 %v94
  %119 = vmatprep.subr.bf16.mxu0 0
  %120 = vmatpush1.bf16.msra.mxu0 0
  %121 = vmatprep.subr.bf16.mxu0 0
  %122 = vmatpush1.bf16.msra.mxu0 0
  %123 = vmatprep.subr.bf16.mxu0 0
  %124 = vmatpush1.bf16.msra.mxu0 0
  %125 = vmatprep.subr.bf16.mxu0 0
  %126 = vmatpush1.bf16.msra.mxu0 0
  %127 = vmatprep.subr.bf16.mxu0 0
  %128 = vmatpush1.bf16.msra.mxu0 0
  %129 = vmatprep.subr.bf16.mxu0 0
  %130 = vmatpush1.bf16.msra.mxu0 0
  %131 = vmatprep.subr.bf16.mxu0 0
  %132 = vmatpush1.bf16.msra.mxu0 0
  %133 = vmatprep.subr.bf16.mxu0 0
  %134 = vmatpush1.bf16.msra.mxu0 0
  %135 = vmatprep.mubr.bf16.mxu0 0
  %136 = vmatmul.mubr.bf16.gmra.mrb[0].mxu0 %v31
  %v137 = vpop.f32.mrb[0].mxu0
  %v138 = vadd.f32 %v53, %v137
  %v139 = vpop.f32.mrb[0].mxu0
  %v140 = vpop.f32.mrb[0].mxu0
  %v141 = vpop.f32.mrb[0].mxu0
  %142 = vdwg.mxu0
  %v143 = vmax.f32 %v138, 0.0
  %v144 = vpack.c.bf16 %v143, %v143
  %v145 = vld [vmem:[%s4] sm:$0xff]
  %v146 = vld [vmem:[%s4 + $0x8] sm:$0xff]
  %v147 = vld [vmem:[%s4 + $0x10] sm:$0xff]
  %v148 = vld [vmem:[%s4 + $0x18] sm:$0xff]
  %v149 = vld [vmem:[%s5] sm:$0x3]
  %v151 = vlaneseq
  %v152 = vshrl.u32 %v151, 7
  %v153 = vsub.s32 0, %v152
  %v154 = vrot.slane %v149, %v153
  %v155 = vlaneseq
  %v156 = vshrl.u32 %v155, 7
  %v157 = vsub.s32 1, %v156
  %v158 = vrot.slane %v149, %v157
  %v165 = vunpack.c.l.b16 %v145
  %v166 = vunpack.c.h.b16 %v145
  %v167 = vunpack.c.l.b16 %v146
  %v168 = vunpack.c.h.b16 %v146
  %v169 = vunpack.c.l.b16 %v147
  %v170 = vunpack.c.h.b16 %v147
  %v171 = vunpack.c.l.b16 %v148
  %v172 = vunpack.c.h.b16 %v148
  %v173 = vpack.c.b16 %v167, %v165
  %v174 = vpack.c.b16 %v168, %v166
  %v175 = vpack.c.b16 %v171, %v169
  %v176 = vpack.c.b16 %v172, %v170
  %vm181 = vcmask 261120
  %v183 = vsel %vm181, %v144, 0
  %185 = vmatprep.subr.bf16.mxu0 %v174
  %186 = vmatpush1.bf16.msra.mxu0 %v173
  %187 = vmatprep.subr.bf16.mxu0 %v176
  %188 = vmatpush1.bf16.msra.mxu0 %v175
  %189 = vmatprep.subr.bf16.mxu0 0
  %190 = vmatpush1.bf16.msra.mxu0 0
  %191 = vmatprep.subr.bf16.mxu0 0
  %192 = vmatpush1.bf16.msra.mxu0 0
  %193 = vmatprep.subr.bf16.mxu0 0
  %194 = vmatpush1.bf16.msra.mxu0 0
  %195 = vmatprep.subr.bf16.mxu0 0
  %196 = vmatpush1.bf16.msra.mxu0 0
  %197 = vmatprep.subr.bf16.mxu0 0
  %198 = vmatpush1.bf16.msra.mxu0 0
  %199 = vmatprep.subr.bf16.mxu0 0
  %200 = vmatpush1.bf16.msra.mxu0 0
  %201 = vmatprep.subr.bf16.mxu0 0
  %202 = vmatpush1.bf16.msra.mxu0 0
  %203 = vmatprep.subr.bf16.mxu0 0
  %204 = vmatpush1.bf16.msra.mxu0 0
  %205 = vmatprep.subr.bf16.mxu0 0
  %206 = vmatpush1.bf16.msra.mxu0 0
  %207 = vmatprep.subr.bf16.mxu0 0
  %208 = vmatpush1.bf16.msra.mxu0 0
  %209 = vmatprep.subr.bf16.mxu0 0
  %210 = vmatpush1.bf16.msra.mxu0 0
  %211 = vmatprep.subr.bf16.mxu0 0
  %212 = vmatpush1.bf16.msra.mxu0 0
  %213 = vmatprep.subr.bf16.mxu0 0
  %214 = vmatpush1.bf16.msra.mxu0 0
  %215 = vmatprep.subr.bf16.mxu0 0
  %216 = vmatpush1.bf16.msra.mxu0 0
  %217 = vmatprep.mubr.bf16.mxu0 0
  %218 = vmatmul.mubr.bf16.gmra.mrb[0].mxu0 %v183
  %v219 = vpop.f32.mrb[0].mxu0
  %v220 = vadd.f32 %v154, %v219
  %v221 = vpop.f32.mrb[0].mxu0
  %v222 = vadd.f32 %v158, %v221
  %v223 = vpop.f32.mrb[0].mxu0
  %v224 = vpop.f32.mrb[0].mxu0
  %225 = vdwg.mxu0
  %v226 = vmax.f32 %v220, 0.0
  %v227 = vmax.f32 %v222, 0.0
  %v228 = vpack.c.bf16 %v226, %v226
  %v229 = vpack.c.bf16 %v227, %v227
  %v230 = vld [vmem:[%s6] sm:$0xff]
  %v231 = vld [vmem:[%s6 + $0x8] sm:$0xff]
  %v232 = vld [vmem:[%s6 + $0x10] sm:$0xff]
  %v233 = vld [vmem:[%s6 + $0x18] sm:$0xff]
  %v234 = vld [vmem:[%s6 + $0x20] sm:$0xff]
  %v235 = vld [vmem:[%s6 + $0x28] sm:$0xff]
  %v236 = vld [vmem:[%s6 + $0x30] sm:$0xff]
  %v237 = vld [vmem:[%s6 + $0x38] sm:$0xff]
  %v238 = vld [vmem:[%s6 + $0x40] sm:$0xff]
  %v239 = vld [vmem:[%s6 + $0x48] sm:$0xff]
  %v240 = vld [vmem:[%s6 + $0x50] sm:$0xff]
  %v241 = vld [vmem:[%s6 + $0x58] sm:$0xff]
  %v242 = vld [vmem:[%s6 + $0x60] sm:$0xff]
  %v243 = vld [vmem:[%s6 + $0x68] sm:$0xff]
  %v244 = vld [vmem:[%s6 + $0x70] sm:$0xff]
  %v245 = vld [vmem:[%s6 + $0x78] sm:$0xff]
  %v246 = vld [vmem:[%s6 + $0x80] sm:$0xff]
  %v247 = vld [vmem:[%s6 + $0x88] sm:$0xff]
  %v248 = vld [vmem:[%s6 + $0x90] sm:$0xff]
  %v249 = vld [vmem:[%s6 + $0x98] sm:$0xff]
  %v250 = vld [vmem:[%s6 + $0xa0] sm:$0xff]
  %v251 = vld [vmem:[%s6 + $0xa8] sm:$0xff]
  %v252 = vld [vmem:[%s6 + $0xb0] sm:$0xff]
  %v253 = vld [vmem:[%s6 + $0xb8] sm:$0xff]
  %v254 = vld [vmem:[%s6 + $0xc0] sm:$0xff]
  %v255 = vld [vmem:[%s6 + $0xc8] sm:$0xff]
  %v256 = vld [vmem:[%s6 + $0xd0] sm:$0xff]
  %v257 = vld [vmem:[%s6 + $0xd8] sm:$0xff]
  %v258 = vld [vmem:[%s6 + $0xe0] sm:$0xff]
  %v259 = vld [vmem:[%s6 + $0xe8] sm:$0xff]
  %v260 = vld [vmem:[%s6 + $0xf0] sm:$0xff]
  %v261 = vld [vmem:[%s6 + $0xf8] sm:$0xff]
  %v262 = vld [vmem:[%s7] sm:$0x3]
  %v264 = vlaneseq
  %v265 = vshrl.u32 %v264, 7
  %v266 = vsub.s32 0, %v265
  %v267 = vrot.slane %v262, %v266
  %v268 = vlaneseq
  %v269 = vshrl.u32 %v268, 7
  %v270 = vsub.s32 1, %v269
  %v271 = vrot.slane %v262, %v270
  %v306 = vunpack.c.l.b16 %v230
  %v307 = vunpack.c.h.b16 %v230
  %v308 = vunpack.c.l.b16 %v231
  %v309 = vunpack.c.h.b16 %v231
  %v310 = vunpack.c.l.b16 %v232
  %v311 = vunpack.c.h.b16 %v232
  %v312 = vunpack.c.l.b16 %v233
  %v313 = vunpack.c.h.b16 %v233
  %v314 = vunpack.c.l.b16 %v234
  %v315 = vunpack.c.h.b16 %v234
  %v316 = vunpack.c.l.b16 %v235
  %v317 = vunpack.c.h.b16 %v235
  %v318 = vunpack.c.l.b16 %v236
  %v319 = vunpack.c.h.b16 %v236
  %v320 = vunpack.c.l.b16 %v237
  %v321 = vunpack.c.h.b16 %v237
  %v322 = vunpack.c.l.b16 %v238
  %v323 = vunpack.c.h.b16 %v238
  %v324 = vunpack.c.l.b16 %v239
  %v325 = vunpack.c.h.b16 %v239
  %v326 = vunpack.c.l.b16 %v240
  %v327 = vunpack.c.h.b16 %v240
  %v328 = vunpack.c.l.b16 %v241
  %v329 = vunpack.c.h.b16 %v241
  %v330 = vunpack.c.l.b16 %v242
  %v331 = vunpack.c.h.b16 %v242
  %v332 = vunpack.c.l.b16 %v243
  %v333 = vunpack.c.h.b16 %v243
  %v334 = vunpack.c.l.b16 %v244
  %v335 = vunpack.c.h.b16 %v244
  %v336 = vunpack.c.l.b16 %v245
  %v337 = vunpack.c.h.b16 %v245
  %v338 = vunpack.c.l.b16 %v246
  %v339 = vunpack.c.h.b16 %v246
  %v340 = vunpack.c.l.b16 %v247
  %v341 = vunpack.c.h.b16 %v247
  %v342 = vunpack.c.l.b16 %v248
  %v343 = vunpack.c.h.b16 %v248
  %v344 = vunpack.c.l.b16 %v249
  %v345 = vunpack.c.h.b16 %v249
  %v346 = vunpack.c.l.b16 %v250
  %v347 = vunpack.c.h.b16 %v250
  %v348 = vunpack.c.l.b16 %v251
  %v349 = vunpack.c.h.b16 %v251
  %v350 = vunpack.c.l.b16 %v252
  %v351 = vunpack.c.h.b16 %v252
  %v352 = vunpack.c.l.b16 %v253
  %v353 = vunpack.c.h.b16 %v253
  %v354 = vunpack.c.l.b16 %v254
  %v355 = vunpack.c.h.b16 %v254
  %v356 = vunpack.c.l.b16 %v255
  %v357 = vunpack.c.h.b16 %v255
  %v358 = vunpack.c.l.b16 %v256
  %v359 = vunpack.c.h.b16 %v256
  %v360 = vunpack.c.l.b16 %v257
  %v361 = vunpack.c.h.b16 %v257
  %v362 = vunpack.c.l.b16 %v258
  %v363 = vunpack.c.h.b16 %v258
  %v364 = vunpack.c.l.b16 %v259
  %v365 = vunpack.c.h.b16 %v259
  %v366 = vunpack.c.l.b16 %v260
  %v367 = vunpack.c.h.b16 %v260
  %v368 = vunpack.c.l.b16 %v261
  %v369 = vunpack.c.h.b16 %v261
  %v370 = vpack.c.b16 %v308, %v306
  %v371 = vpack.c.b16 %v309, %v307
  %v372 = vpack.c.b16 %v312, %v310
  %v373 = vpack.c.b16 %v313, %v311
  %v374 = vpack.c.b16 %v316, %v314
  %v375 = vpack.c.b16 %v317, %v315
  %v376 = vpack.c.b16 %v320, %v318
  %v377 = vpack.c.b16 %v321, %v319
  %v378 = vpack.c.b16 %v324, %v322
  %v379 = vpack.c.b16 %v325, %v323
  %v380 = vpack.c.b16 %v328, %v326
  %v381 = vpack.c.b16 %v329, %v327
  %v382 = vpack.c.b16 %v332, %v330
  %v383 = vpack.c.b16 %v333, %v331
  %v384 = vpack.c.b16 %v336, %v334
  %v385 = vpack.c.b16 %v337, %v335
  %v386 = vpack.c.b16 %v340, %v338
  %v387 = vpack.c.b16 %v341, %v339
  %v388 = vpack.c.b16 %v344, %v342
  %v389 = vpack.c.b16 %v345, %v343
  %v390 = vpack.c.b16 %v348, %v346
  %v391 = vpack.c.b16 %v349, %v347
  %v392 = vpack.c.b16 %v352, %v350
  %v393 = vpack.c.b16 %v353, %v351
  %v394 = vpack.c.b16 %v356, %v354
  %v395 = vpack.c.b16 %v357, %v355
  %v396 = vpack.c.b16 %v360, %v358
  %v397 = vpack.c.b16 %v361, %v359
  %v398 = vpack.c.b16 %v364, %v362
  %v399 = vpack.c.b16 %v365, %v363
  %v400 = vpack.c.b16 %v368, %v366
  %v401 = vpack.c.b16 %v369, %v367
  %434 = vmatprep.subr.bf16.mxu0 %v371
  %435 = vmatpush1.bf16.msra.mxu0 %v370
  %436 = vmatprep.subr.bf16.mxu0 %v373
  %437 = vmatpush1.bf16.msra.mxu0 %v372
  %438 = vmatprep.subr.bf16.mxu0 %v375
  %439 = vmatpush1.bf16.msra.mxu0 %v374
  %440 = vmatprep.subr.bf16.mxu0 %v377
  %441 = vmatpush1.bf16.msra.mxu0 %v376
  %442 = vmatprep.subr.bf16.mxu0 %v379
  %443 = vmatpush1.bf16.msra.mxu0 %v378
  %444 = vmatprep.subr.bf16.mxu0 %v381
  %445 = vmatpush1.bf16.msra.mxu0 %v380
  %446 = vmatprep.subr.bf16.mxu0 %v383
  %447 = vmatpush1.bf16.msra.mxu0 %v382
  %448 = vmatprep.subr.bf16.mxu0 %v385
  %449 = vmatpush1.bf16.msra.mxu0 %v384
  %450 = vmatprep.subr.bf16.mxu0 %v387
  %451 = vmatpush1.bf16.msra.mxu0 %v386
  %452 = vmatprep.subr.bf16.mxu0 %v389
  %453 = vmatpush1.bf16.msra.mxu0 %v388
  %454 = vmatprep.subr.bf16.mxu0 %v391
  %455 = vmatpush1.bf16.msra.mxu0 %v390
  %456 = vmatprep.subr.bf16.mxu0 %v393
  %457 = vmatpush1.bf16.msra.mxu0 %v392
  %458 = vmatprep.subr.bf16.mxu0 %v395
  %459 = vmatpush1.bf16.msra.mxu0 %v394
  %460 = vmatprep.subr.bf16.mxu0 %v397
  %461 = vmatpush1.bf16.msra.mxu0 %v396
  %462 = vmatprep.subr.bf16.mxu0 %v399
  %463 = vmatpush1.bf16.msra.mxu0 %v398
  %464 = vmatprep.subr.bf16.mxu0 %v401
  %465 = vmatpush1.bf16.msra.mxu0 %v400
  %466 = vmatprep.mubr.bf16.mxu0 %v229
  %467 = vmatmul.mubr.bf16.gmra.mrb[0].mxu0 %v228
  %v468 = vpop.f32.mrb[0].mxu0
  %v469 = vadd.f32 %v267, %v468
  %v470 = vpop.f32.mrb[0].mxu0
  %v471 = vadd.f32 %v271, %v470
  %v472 = vpop.f32.mrb[0].mxu0
  %v473 = vpop.f32.mrb[0].mxu0
  %474 = vdwg.mxu0
  %v475 = vld [vmem:[%s1] sm:$0xff]
  %v476 = vsub.f32 0.0, %v469
  %v477 = vsub.f32 0.0, %v471
  %v478 = vmul.f32 %v476, 1.442695
  %v479 = vpow.pop %v478
  %v480 = vmul.f32 %v477, 1.442695
  %v481 = vpow.pop %v480
  %v482 = vadd.f32 %v479, 1.0
  %v483 = vadd.f32 %v481, 1.0
  %v484 = vrcp.pop %v482
  %v485 = vrcp.pop %v483
  %487 = vset.pattern.permute.xlu0 0
  %488 = vperm.xlu0 %487, %v475
  %v489 = vpop.permute.xlu0 %488
  %v491 = vmul.f32 %v484, %v489
  %v492 = vmul.f32 %v485, %v489
  %493 = vst [vmem:[%s8] sm:$0xff] %v491
  %494 = vst [vmem:[%s8 + $0x8] sm:$0xff] %v492
  // Predicated region
  $region34: #{smvae_beta_forward.5} parent=0 // pred_check
    _
  $region35: #{smvae_beta_forward.5} parent=0 // pred_check_branch
    %496 = sbr.rel (0) target = $region37
  $region36: #{smvae_beta_forward.5} parent=0 // pred_region
    _
  $region37: #{smvae_beta_forward.5} parent=0 // pred_fallthru
    _
  // Predicated region
  $region38: #{smvae_beta_forward.5} parent=0 // pred_check
    _
  $region39: #{smvae_beta_forward.5} parent=0 // pred_check_branch
    %498 = sbr.rel (0) target = $region41
  $region40: #{smvae_beta_forward.5} parent=0 // pred_region
    _
  $region41: #{smvae_beta_forward.5} parent=0 // pred_fallthru
    _

</llo_original>
